<compile_context>
chip_gen: v6e
topology: v6e:2x2x1
jax: 0.10.0
libtpu: 0.0.40
codegen_flags: <defaults>
</compile_context>

<pallas_src>
import jax
import jax.numpy as jnp
from jax import lax
from jax.experimental import pallas as pl
from jax.experimental.pallas import tpu as pltpu

# ---- hyper-parameters (stand-in for getSettings()) ----
LRELU_ALPHA = 0.01
CRITIC_NN = 32          # hidden width
STATE_DIM = 4
ACTION_DIM = 4
BATCH = 8

_LANE = 128
_MAX_TB = 1024          # max batch-tile rows (amortizes per-step overhead)


def _round_up(x, m):
    return (x + m - 1) // m * m


def _cdiv(a, b):
    return (a + b - 1) // b


def _choose_tiling(B):
    """Pick (tile_rows, padded_batch): lane-dense tiles, as big as sensible,
    and an even tile count for large batches so both v7x TCs get work."""
    B_pad = _round_up(B, _LANE)
    if B_pad <= _MAX_TB:
        return B_pad, B_pad                       # single big tile
    num = _cdiv(B_pad, _MAX_TB)
    num += num % 2                                # even number of tiles
    tb = _round_up(_cdiv(B_pad, num), _LANE)
    return tb, tb * num


def _leaky_relu(h):
    return jnp.where(h > 0, h, LRELU_ALPHA * h)


def critic_kernel(s_ref, a_ref,
                  w1s_ref, w1a_ref, b1_ref,
                  w2_ref, b2_ref,
                  w3_ref, b3_ref,
                  w4_ref, b4_ref,
                  o_ref):
    """One TB-row batch tile, feature-major (H, TB); weights VMEM-resident."""
    # Layer 1 with the concat fused and transposed into feature-major:
    #   (H, S)·(TB, S)ᵀ + (H, A)·(TB, A)ᵀ + b1 -> (H, TB)
    dn = (((1,), (1,)), ((), ()))
    h = (lax.dot_general(w1s_ref[...], s_ref[...], dn,
                         preferred_element_type=jnp.float32)
         + lax.dot_general(w1a_ref[...], a_ref[...], dn,
                           preferred_element_type=jnp.float32)
         + b1_ref[...])
    h = _leaky_relu(h)

    h = jnp.dot(w2_ref[...], h, preferred_element_type=jnp.float32) + b2_ref[...]
    h = _leaky_relu(h)

    h = jnp.dot(w3_ref[...], h, preferred_element_type=jnp.float32) + b3_ref[...]
    h = _leaky_relu(h)

    # Head: (1, H) @ (H, TB) -> (1, TB), stored lane-dense (full-width vst).
    q = jnp.dot(w4_ref[...], h, preferred_element_type=jnp.float32) + b4_ref[...]
    o_ref[...] = q.astype(o_ref.dtype)


def critic_forward(state, action, params):
    """JAX wrapper: pad/tile the batch and run the kernel. Params are already
    in kernel layout (split W1, torch-native (out,in) weights, column biases),
    so there is no per-call parameter reshaping here."""
    B, S = state.shape
    A = action.shape[1]
    w1s, w1a, b1, w2, b2, w3, b3, w4, b4 = params

    TB, B_pad = _choose_tiling(B)
    if B_pad != B:
        pad = B_pad - B
        state = jnp.pad(state, ((0, pad), (0, 0)))
        action = jnp.pad(action, ((0, pad), (0, 0)))
    num_tiles = B_pad // TB

    # Weights/biases: full-array blocks, constant index_map -> VMEM-resident.
    resident = lambda arr: pl.BlockSpec(arr.shape, lambda i: (0,) * arr.ndim)

    out_t = pl.pallas_call(
        critic_kernel,
        out_shape=jax.ShapeDtypeStruct((1, B_pad), jnp.float32),
        grid_spec=pltpu.PrefetchScalarGridSpec(
            num_scalar_prefetch=0,
            grid=(num_tiles,),
            in_specs=[pl.BlockSpec((TB, S), lambda i: (i, 0)),   # state tile
                      pl.BlockSpec((TB, A), lambda i: (i, 0)),   # action tile
                      resident(w1s), resident(w1a), resident(b1),
                      resident(w2), resident(b2),
                      resident(w3), resident(b3),
                      resident(w4), resident(b4)],
            out_specs=pl.BlockSpec((1, TB), lambda i: (0, i)),   # lane-dense
        ),
        compiler_params=pltpu.CompilerParams(
            dimension_semantics=("parallel",)),                  # megacore
    )(state, action, w1s, w1a, b1, w2, b2, w3, b3, w4, b4)

    # (1, B_pad) -> (B, 1); padded rows are discarded here.
    return out_t[0, :B].reshape(B, 1)


def init_params(key, state_dim, action_dim, hidden):
    """PyTorch-style uniform(-1/sqrt(fan_in), 1/sqrt(fan_in)) init, produced
    directly in kernel layout (hoisted out of the forward path):
      w1s (H, S), w1a (H, A)   -- torch-native (out, in), W1 pre-split
      w2, w3 (H, H); w4 (1, H)
      b1..b3 (H, 1); b4 (1, 1) -- column biases for (H, TB) activations
    """
    H = hidden

    def uniform(k, shape, fan_in):
        bound = 1.0 / float(fan_in) ** 0.5
        return jax.random.uniform(k, shape, jnp.float32, -bound, bound)

    keys = jax.random.split(key, 8)
    fan1 = state_dim + action_dim
    w1 = uniform(keys[0], (H, fan1), fan1)
    b1 = uniform(keys[1], (H, 1), fan1)
    w2 = uniform(keys[2], (H, H), H)
    b2 = uniform(keys[3], (H, 1), H)
    w3 = uniform(keys[4], (H, H), H)
    b3 = uniform(keys[5], (H, 1), H)
    w4 = uniform(keys[6], (1, H), H)
    b4 = uniform(keys[7], (1, 1), H)
    w1s = w1[:, :state_dim]
    w1a = w1[:, state_dim:]
    return (w1s, w1a, b1, w2, b2, w3, b3, w4, b4)


def critic_ref(state, action, params):
    """Pure-JAX reference for correctness checking."""
    w1s, w1a, b1, w2, b2, w3, b3, w4, b4 = params
    x = jnp.concatenate([state, action], axis=1)
    w1 = jnp.concatenate([w1s, w1a], axis=1)          # (H, S+A), torch layout
    lr = lambda h: jnp.where(h > 0, h, LRELU_ALPHA * h)
    h = lr(x @ w1.T + b1.T)
    h = lr(h @ w2.T + b2.T)
    h = lr(h @ w3.T + b3.T)
    return h @ w4.T + b4.T


if __name__ == "__main__":
    key = jax.random.PRNGKey(0)
    k_state, k_action, k_params = jax.random.split(key, 3)

    params = init_params(k_params, STATE_DIM, ACTION_DIM, CRITIC_NN)
    fwd = jax.jit(critic_forward)

    # Small case (B=8): single 128-row padded tile.
    state = jax.random.normal(k_state, (BATCH, STATE_DIM), jnp.float32)
    action = jax.random.normal(k_action, (BATCH, ACTION_DIM), jnp.float32)
    out = jax.block_until_ready(fwd(state, action, params))
    ref = critic_ref(state, action, params)
    assert out.shape == (BATCH, 1), out.shape
    assert jnp.allclose(out, ref, atol=1e-4, rtol=1e-4), (out, ref)

    # Non-multiple-of-128 batch: single padded tile.
    B2 = 200
    k_s2, k_a2 = jax.random.split(jax.random.PRNGKey(1))
    state2 = jax.random.normal(k_s2, (B2, STATE_DIM), jnp.float32)
    action2 = jax.random.normal(k_a2, (B2, ACTION_DIM), jnp.float32)
    out2 = jax.block_until_ready(fwd(state2, action2, params))
    ref2 = critic_ref(state2, action2, params)
    assert out2.shape == (B2, 1), out2.shape
    assert jnp.allclose(out2, ref2, atol=1e-4, rtol=1e-4), (out2, ref2)

    # Large batch: exercises the multi-tile grid path (even tile count).
    B3 = 2500
    k_s3, k_a3 = jax.random.split(jax.random.PRNGKey(2))
    state3 = jax.random.normal(k_s3, (B3, STATE_DIM), jnp.float32)
    action3 = jax.random.normal(k_a3, (B3, ACTION_DIM), jnp.float32)
    out3 = jax.block_until_ready(fwd(state3, action3, params))
    ref3 = critic_ref(state3, action3, params)
    assert out3.shape == (B3, 1), out3.shape
    assert jnp.allclose(out3, ref3, atol=1e-4, rtol=1e-4), (out3, ref3)

    print("KERNEL_OK")
</pallas_src>

<mosaic_0001>
module attributes {stable_mosaic.version = 11 : i64} {
  func.func @critic_kernel(%arg0: i32, %arg1: memref<128x4xf32, #tpu.memory_space<vmem>>, %arg2: memref<128x4xf32, #tpu.memory_space<vmem>>, %arg3: memref<32x4xf32, #tpu.memory_space<vmem>>, %arg4: memref<32x4xf32, #tpu.memory_space<vmem>>, %arg5: memref<32x1xf32, #tpu.memory_space<vmem>>, %arg6: memref<32x32xf32, #tpu.memory_space<vmem>>, %arg7: memref<32x1xf32, #tpu.memory_space<vmem>>, %arg8: memref<32x32xf32, #tpu.memory_space<vmem>>, %arg9: memref<32x1xf32, #tpu.memory_space<vmem>>, %arg10: memref<1x32xf32, #tpu.memory_space<vmem>>, %arg11: memref<1x1xf32, #tpu.memory_space<vmem>>, %arg12: memref<1x128xf32, #tpu.memory_space<vmem>>) attributes {dimension_semantics = [#tpu.dimension_semantics<parallel>], iteration_bounds = array<i64: 1>, scalar_prefetch = 0 : i64, scratch_operands = 0 : i64, tpu.core_type = #tpu.core_type<tc>, window_params = [{transform_indices = @transform_0, window_bounds = array<i64: 128, 4>}, {transform_indices = @transform_1, window_bounds = array<i64: 128, 4>}, {pipeline_mode = #tpu.pipeline_mode<synchronous>, transform_indices = @transform_2, window_bounds = array<i64: 32, 4>}, {pipeline_mode = #tpu.pipeline_mode<synchronous>, transform_indices = @transform_3, window_bounds = array<i64: 32, 4>}, {pipeline_mode = #tpu.pipeline_mode<synchronous>, transform_indices = @transform_4, window_bounds = array<i64: 32, 1>}, {pipeline_mode = #tpu.pipeline_mode<synchronous>, transform_indices = @transform_5, window_bounds = array<i64: 32, 32>}, {pipeline_mode = #tpu.pipeline_mode<synchronous>, transform_indices = @transform_6, window_bounds = array<i64: 32, 1>}, {pipeline_mode = #tpu.pipeline_mode<synchronous>, transform_indices = @transform_7, window_bounds = array<i64: 32, 32>}, {pipeline_mode = #tpu.pipeline_mode<synchronous>, transform_indices = @transform_8, window_bounds = array<i64: 32, 1>}, {pipeline_mode = #tpu.pipeline_mode<synchronous>, transform_indices = @transform_9, window_bounds = array<i64: 1, 32>}, {pipeline_mode = #tpu.pipeline_mode<synchronous>, transform_indices = @transform_10, window_bounds = array<i64: 1, 1>}, {transform_indices = @transform_11, window_bounds = array<i64: 1, 128>}]} {
    %c0 = arith.constant 0 : index
    %c0_0 = arith.constant 0 : index
    %0 = vector.load %arg3[%c0, %c0_0] : memref<32x4xf32, #tpu.memory_space<vmem>>, vector<32x4xf32>
    %c0_1 = arith.constant 0 : index
    %c0_2 = arith.constant 0 : index
    %1 = vector.load %arg1[%c0_1, %c0_2] : memref<128x4xf32, #tpu.memory_space<vmem>>, vector<128x4xf32>
    %cst = arith.constant dense<0.000000e+00> : vector<32x128xf32>
    %2 = tpu.matmul %0, %1, %cst {dimension_numbers = #tpu.dot_dimension_numbers<[1], [1], [0], [0], [0, 0, 1, 0], [], []>} : vector<32x4xf32>, vector<128x4xf32>, vector<32x128xf32> -> vector<32x128xf32>
    %c0_3 = arith.constant 0 : index
    %c0_4 = arith.constant 0 : index
    %3 = vector.load %arg4[%c0_3, %c0_4] : memref<32x4xf32, #tpu.memory_space<vmem>>, vector<32x4xf32>
    %c0_5 = arith.constant 0 : index
    %c0_6 = arith.constant 0 : index
    %4 = vector.load %arg2[%c0_5, %c0_6] : memref<128x4xf32, #tpu.memory_space<vmem>>, vector<128x4xf32>
    %cst_7 = arith.constant dense<0.000000e+00> : vector<32x128xf32>
    %5 = tpu.matmul %3, %4, %cst_7 {dimension_numbers = #tpu.dot_dimension_numbers<[1], [1], [0], [0], [0, 0, 1, 0], [], []>} : vector<32x4xf32>, vector<128x4xf32>, vector<32x128xf32> -> vector<32x128xf32>
    %6 = arith.addf %2, %5 : vector<32x128xf32>
    %c0_8 = arith.constant 0 : index
    %c0_9 = arith.constant 0 : index
    %7 = vector.load %arg5[%c0_8, %c0_9] : memref<32x1xf32, #tpu.memory_space<vmem>>, vector<32x1xf32>
    %8 = vector.broadcast %7 : vector<32x1xf32> to vector<32x128xf32>
    %9 = arith.addf %6, %8 : vector<32x128xf32>
    %cst_10 = arith.constant 0.000000e+00 : f32
    %10 = vector.broadcast %cst_10 : f32 to vector<32x128xf32>
    %11 = arith.cmpf ogt, %9, %10 : vector<32x128xf32>
    %cst_11 = arith.constant 0.00999999977 : f32
    %12 = vector.broadcast %cst_11 : f32 to vector<32x128xf32>
    %13 = arith.mulf %12, %9 : vector<32x128xf32>
    %14 = arith.select %11, %9, %13 : vector<32x128xi1>, vector<32x128xf32>
    %c0_12 = arith.constant 0 : index
    %c0_13 = arith.constant 0 : index
    %15 = vector.load %arg6[%c0_12, %c0_13] : memref<32x32xf32, #tpu.memory_space<vmem>>, vector<32x32xf32>
    %cst_14 = arith.constant dense<0.000000e+00> : vector<32x128xf32>
    %16 = tpu.matmul %15, %14, %cst_14 {dimension_numbers = #tpu.dot_dimension_numbers<[1], [0], [0], [1], [0, 0, 1, 1], [], []>} : vector<32x32xf32>, vector<32x128xf32>, vector<32x128xf32> -> vector<32x128xf32>
    %c0_15 = arith.constant 0 : index
    %c0_16 = arith.constant 0 : index
    %17 = vector.load %arg7[%c0_15, %c0_16] : memref<32x1xf32, #tpu.memory_space<vmem>>, vector<32x1xf32>
    %18 = vector.broadcast %17 : vector<32x1xf32> to vector<32x128xf32>
    %19 = arith.addf %16, %18 : vector<32x128xf32>
    %cst_17 = arith.constant 0.000000e+00 : f32
    %20 = vector.broadcast %cst_17 : f32 to vector<32x128xf32>
    %21 = arith.cmpf ogt, %19, %20 : vector<32x128xf32>
    %cst_18 = arith.constant 0.00999999977 : f32
    %22 = vector.broadcast %cst_18 : f32 to vector<32x128xf32>
    %23 = arith.mulf %22, %19 : vector<32x128xf32>
    %24 = arith.select %21, %19, %23 : vector<32x128xi1>, vector<32x128xf32>
    %c0_19 = arith.constant 0 : index
    %c0_20 = arith.constant 0 : index
    %25 = vector.load %arg8[%c0_19, %c0_20] : memref<32x32xf32, #tpu.memory_space<vmem>>, vector<32x32xf32>
    %cst_21 = arith.constant dense<0.000000e+00> : vector<32x128xf32>
    %26 = tpu.matmul %25, %24, %cst_21 {dimension_numbers = #tpu.dot_dimension_numbers<[1], [0], [0], [1], [0, 0, 1, 1], [], []>} : vector<32x32xf32>, vector<32x128xf32>, vector<32x128xf32> -> vector<32x128xf32>
    %c0_22 = arith.constant 0 : index
    %c0_23 = arith.constant 0 : index
    %27 = vector.load %arg9[%c0_22, %c0_23] : memref<32x1xf32, #tpu.memory_space<vmem>>, vector<32x1xf32>
    %28 = vector.broadcast %27 : vector<32x1xf32> to vector<32x128xf32>
    %29 = arith.addf %26, %28 : vector<32x128xf32>
    %cst_24 = arith.constant 0.000000e+00 : f32
    %30 = vector.broadcast %cst_24 : f32 to vector<32x128xf32>
    %31 = arith.cmpf ogt, %29, %30 : vector<32x128xf32>
    %cst_25 = arith.constant 0.00999999977 : f32
    %32 = vector.broadcast %cst_25 : f32 to vector<32x128xf32>
    %33 = arith.mulf %32, %29 : vector<32x128xf32>
    %34 = arith.select %31, %29, %33 : vector<32x128xi1>, vector<32x128xf32>
    %c0_26 = arith.constant 0 : index
    %c0_27 = arith.constant 0 : index
    %35 = vector.load %arg10[%c0_26, %c0_27] : memref<1x32xf32, #tpu.memory_space<vmem>>, vector<1x32xf32>
    %cst_28 = arith.constant dense<0.000000e+00> : vector<1x128xf32>
    %36 = tpu.matmul %35, %34, %cst_28 {dimension_numbers = #tpu.dot_dimension_numbers<[1], [0], [0], [1], [0, 0, 1, 1], [], []>} : vector<1x32xf32>, vector<32x128xf32>, vector<1x128xf32> -> vector<1x128xf32>
    %c0_29 = arith.constant 0 : index
    %c0_30 = arith.constant 0 : index
    %37 = vector.load %arg11[%c0_29, %c0_30] : memref<1x1xf32, #tpu.memory_space<vmem>>, vector<1x1xf32>
    %38 = vector.broadcast %37 : vector<1x1xf32> to vector<1x128xf32>
    %39 = arith.addf %36, %38 : vector<1x128xf32>
    %c0_31 = arith.constant 0 : index
    %c0_32 = arith.constant 0 : index
    %40 = vector.load %arg12[%c0_31, %c0_32] : memref<1x128xf32, #tpu.memory_space<vmem>>, vector<1x128xf32>
    tpu.vector_store %arg12[%c0_31, %c0_32], %39 {strides = array<i32>} : memref<1x128xf32, #tpu.memory_space<vmem>>, vector<1x128xf32>,
    return
  }
  func.func @transform_0(%arg0: i32) -> (i32, i32) {
    %c0_i32 = arith.constant 0 : i32
    %c0_i32_0 = arith.constant 0 : i32
    return %arg0, %c0_i32 : i32, i32
  }
  func.func @transform_1(%arg0: i32) -> (i32, i32) {
    %c0_i32 = arith.constant 0 : i32
    %c0_i32_0 = arith.constant 0 : i32
    return %arg0, %c0_i32 : i32, i32
  }
  func.func @transform_2(%arg0: i32) -> (i32, i32) {
    %c0_i32 = arith.constant 0 : i32
    %c0_i32_0 = arith.constant 0 : i32
    %c0_i32_1 = arith.constant 0 : i32
    return %c0_i32, %c0_i32_0 : i32, i32
  }
  func.func @transform_3(%arg0: i32) -> (i32, i32) {
    %c0_i32 = arith.constant 0 : i32
    %c0_i32_0 = arith.constant 0 : i32
    %c0_i32_1 = arith.constant 0 : i32
    return %c0_i32, %c0_i32_0 : i32, i32
  }
  func.func @transform_4(%arg0: i32) -> (i32, i32) {
    %c0_i32 = arith.constant 0 : i32
    %c0_i32_0 = arith.constant 0 : i32
    %c0_i32_1 = arith.constant 0 : i32
    return %c0_i32, %c0_i32_0 : i32, i32
  }
  func.func @transform_5(%arg0: i32) -> (i32, i32) {
    %c0_i32 = arith.constant 0 : i32
    %c0_i32_0 = arith.constant 0 : i32
    %c0_i32_1 = arith.constant 0 : i32
    return %c0_i32, %c0_i32_0 : i32, i32
  }
  func.func @transform_6(%arg0: i32) -> (i32, i32) {
    %c0_i32 = arith.constant 0 : i32
    %c0_i32_0 = arith.constant 0 : i32
    %c0_i32_1 = arith.constant 0 : i32
    return %c0_i32, %c0_i32_0 : i32, i32
  }
  func.func @transform_7(%arg0: i32) -> (i32, i32) {
    %c0_i32 = arith.constant 0 : i32
    %c0_i32_0 = arith.constant 0 : i32
    %c0_i32_1 = arith.constant 0 : i32
    return %c0_i32, %c0_i32_0 : i32, i32
  }
  func.func @transform_8(%arg0: i32) -> (i32, i32) {
    %c0_i32 = arith.constant 0 : i32
    %c0_i32_0 = arith.constant 0 : i32
    %c0_i32_1 = arith.constant 0 : i32
    return %c0_i32, %c0_i32_0 : i32, i32
  }
  func.func @transform_9(%arg0: i32) -> (i32, i32) {
    %c0_i32 = arith.constant 0 : i32
    %c0_i32_0 = arith.constant 0 : i32
    %c0_i32_1 = arith.constant 0 : i32
    return %c0_i32, %c0_i32_0 : i32, i32
  }
  func.func @transform_10(%arg0: i32) -> (i32, i32) {
    %c0_i32 = arith.constant 0 : i32
    %c0_i32_0 = arith.constant 0 : i32
    %c0_i32_1 = arith.constant 0 : i32
    return %c0_i32, %c0_i32_0 : i32, i32
  }
  func.func @transform_11(%arg0: i32) -> (i32, i32) {
    %c0_i32 = arith.constant 0 : i32
    %c0_i32_0 = arith.constant 0 : i32
    return %c0_i32, %arg0 : i32, i32
  }
}

</mosaic_0001>

<llo_original>
// kernel: critic_forward.1
$region0: #{critic_forward.1}
  #allocation0 [shape = 'u32[]', space=smem, size = 0x4, offset = 0x4, fixed_abs, tag = 'smem constant byte address 0x4 - core index']
  #allocation1 [shape = 'u32[144,128]{1,0:T(1,128)}', space=vmem, size = 0x12000, scoped, tag = 'internal scratch']
  #allocation2 [shape = 'f32[1,1]{1,0:T(1,128)S(1)}', space=vmem, size = 0x200, scoped, tag = 'scoped memory for critic_forward.1']
  %s0 = inlined_call_operand.vmem [shape: f32[128,4], index: 0, kind: input, shape index: {}]
  %s1 = inlined_call_operand.vmem [shape: f32[128,4], index: 1, kind: input, shape index: {}]
  %s2 = inlined_call_operand.vmem [shape: f32[32,4], index: 2, kind: input, shape index: {}]
  %s3 = inlined_call_operand.vmem [shape: f32[32,4], index: 3, kind: input, shape index: {}]
  %s4 = inlined_call_operand.vmem [shape: f32[32,1], index: 4, kind: input, shape index: {}]
  %s5 = inlined_call_operand.vmem [shape: f32[32,32], index: 5, kind: input, shape index: {}]
  %s6 = inlined_call_operand.vmem [shape: f32[32,1], index: 6, kind: input, shape index: {}]
  %s7 = inlined_call_operand.vmem [shape: f32[32,32], index: 7, kind: input, shape index: {}]
  %s8 = inlined_call_operand.vmem [shape: f32[32,1], index: 8, kind: input, shape index: {}]
  %s9 = inlined_call_operand.vmem [shape: f32[1,32], index: 9, kind: input, shape index: {}]
  %s10 = inlined_call_operand.<no memory space> [shape: f32[1,1], index: 10, kind: input, shape index: {}]
  %s11 = inlined_call_operand.vmem [shape: f32[1,128], index: 11, kind: output, shape index: {}]
  %s12 = sld [smem:[#allocation0]]
  $region54: #{critic_forward.1} parent=0
    _
  %s14 = ssub.s32 1, %s12
  %s15 = scalar_select 0, %s14, %s12
  %v16 = vstv %s10
  %17 = vst [vmem:[#allocation2] sm:$0x1] %v16
  // Predicated region
  $region2: #{critic_forward.1} parent=0 // pred_check
    _
  $region3: #{critic_forward.1} parent=0 // pred_check_branch
    %19 = sbr.rel (0) target = $region5
  $region4: #{critic_forward.1} parent=0 // pred_region
    _
  $region5: #{critic_forward.1} parent=0 // pred_fallthru
    _
  // Predicated region
  $region6: #{critic_forward.1} parent=0 // pred_check
    _
  $region7: #{critic_forward.1} parent=0 // pred_check_branch
    %21 = sbr.rel (0) target = $region9
  $region8: #{critic_forward.1} parent=0 // pred_region
    _
  $region9: #{critic_forward.1} parent=0 // pred_fallthru
    _
  // Predicated region
  $region10: #{critic_forward.1} parent=0 // pred_check
    _
  $region11: #{critic_forward.1} parent=0 // pred_check_branch
    %23 = sbr.rel (0) target = $region13
  $region12: #{critic_forward.1} parent=0 // pred_region
    _
  $region13: #{critic_forward.1} parent=0 // pred_fallthru
    _
  // Predicated region
  $region14: #{critic_forward.1} parent=0 // pred_check
    _
  $region15: #{critic_forward.1} parent=0 // pred_check_branch
    %25 = sbr.rel (0) target = $region17
  $region16: #{critic_forward.1} parent=0 // pred_region
    _
  $region17: #{critic_forward.1} parent=0 // pred_fallthru
    _
  // Predicated region
  $region18: #{critic_forward.1} parent=0 // pred_check
    _
  $region19: #{critic_forward.1} parent=0 // pred_check_branch
    %27 = sbr.rel (0) target = $region21
  $region20: #{critic_forward.1} parent=0 // pred_region
    _
  $region21: #{critic_forward.1} parent=0 // pred_fallthru
    _
  // Predicated region
  $region22: #{critic_forward.1} parent=0 // pred_check
    _
  $region23: #{critic_forward.1} parent=0 // pred_check_branch
    %29 = sbr.rel (0) target = $region25
  $region24: #{critic_forward.1} parent=0 // pred_region
    _
  $region25: #{critic_forward.1} parent=0 // pred_fallthru
    _
  // Predicated region
  $region26: #{critic_forward.1} parent=0 // pred_check
    _
  $region27: #{critic_forward.1} parent=0 // pred_check_branch
    %31 = sbr.rel (0) target = $region29
  $region28: #{critic_forward.1} parent=0 // pred_region
    _
  $region29: #{critic_forward.1} parent=0 // pred_fallthru
    _
  // Predicated region
  $region30: #{critic_forward.1} parent=0 // pred_check
    _
  $region31: #{critic_forward.1} parent=0 // pred_check_branch
    %33 = sbr.rel (0) target = $region33
  $region32: #{critic_forward.1} parent=0 // pred_region
    _
  $region33: #{critic_forward.1} parent=0 // pred_fallthru
    _
  // Predicated region
  $region34: #{critic_forward.1} parent=0 // pred_check
    _
  $region35: #{critic_forward.1} parent=0 // pred_check_branch
    %35 = sbr.rel (0) target = $region37
  $region36: #{critic_forward.1} parent=0 // pred_region
    _
  $region37: #{critic_forward.1} parent=0 // pred_fallthru
    _
  // Predicated region
  $region38: #{critic_forward.1} parent=0 // pred_check
    _
  $region39: #{critic_forward.1} parent=0 // pred_check_branch
    %37 = sbr.rel (0) target = $region41
  $region40: #{critic_forward.1} parent=0 // pred_region
    _
  $region41: #{critic_forward.1} parent=0 // pred_fallthru
    _
  // Predicated region
  $region42: #{critic_forward.1} parent=0 // pred_check
    _
  $region43: #{critic_forward.1} parent=0 // pred_check_branch
    %39 = sbr.rel (0) target = $region45
  $region44: #{critic_forward.1} parent=0 // pred_region
    _
  $region45: #{critic_forward.1} parent=0 // pred_fallthru
    _
  %v40 = vld [vmem:[%s2] sm:$0xff]
  %v41 = vld [vmem:[%s2 + $0x8] sm:$0xff]
  %v42 = vld [vmem:[%s2 + $0x10] sm:$0xff]
  %v43 = vld [vmem:[%s2 + $0x18] sm:$0xff]
  %v44 = vld [vmem:[%s0] sm:$0xff]
  %v45 = vld [vmem:[%s0 + $0x8] sm:$0xff]
  %v46 = vld [vmem:[%s0 + $0x10] sm:$0xff]
  %v47 = vld [vmem:[%s0 + $0x18] sm:$0xff]
  %v48 = vld [vmem:[%s0 + $0x20] sm:$0xff]
  %v49 = vld [vmem:[%s0 + $0x28] sm:$0xff]
  %v50 = vld [vmem:[%s0 + $0x30] sm:$0xff]
  %v51 = vld [vmem:[%s0 + $0x38] sm:$0xff]
  %v52 = vld [vmem:[%s0 + $0x40] sm:$0xff]
  %v53 = vld [vmem:[%s0 + $0x48] sm:$0xff]
  %v54 = vld [vmem:[%s0 + $0x50] sm:$0xff]
  %v55 = vld [vmem:[%s0 + $0x58] sm:$0xff]
  %v56 = vld [vmem:[%s0 + $0x60] sm:$0xff]
  %v57 = vld [vmem:[%s0 + $0x68] sm:$0xff]
  %v58 = vld [vmem:[%s0 + $0x70] sm:$0xff]
  %v59 = vld [vmem:[%s0 + $0x78] sm:$0xff]
  %v60 = vld [vmem:[%s3] sm:$0xff]
  %v61 = vld [vmem:[%s3 + $0x8] sm:$0xff]
  %v62 = vld [vmem:[%s3 + $0x10] sm:$0xff]
  %v63 = vld [vmem:[%s3 + $0x18] sm:$0xff]
  %v64 = vld [vmem:[%s1] sm:$0xff]
  %v65 = vld [vmem:[%s1 + $0x8] sm:$0xff]
  %v66 = vld [vmem:[%s1 + $0x10] sm:$0xff]
  %v67 = vld [vmem:[%s1 + $0x18] sm:$0xff]
  %v68 = vld [vmem:[%s1 + $0x20] sm:$0xff]
  %v69 = vld [vmem:[%s1 + $0x28] sm:$0xff]
  %v70 = vld [vmem:[%s1 + $0x30] sm:$0xff]
  %v71 = vld [vmem:[%s1 + $0x38] sm:$0xff]
  %v72 = vld [vmem:[%s1 + $0x40] sm:$0xff]
  %v73 = vld [vmem:[%s1 + $0x48] sm:$0xff]
  %v74 = vld [vmem:[%s1 + $0x50] sm:$0xff]
  %v75 = vld [vmem:[%s1 + $0x58] sm:$0xff]
  %v76 = vld [vmem:[%s1 + $0x60] sm:$0xff]
  %v77 = vld [vmem:[%s1 + $0x68] sm:$0xff]
  %v78 = vld [vmem:[%s1 + $0x70] sm:$0xff]
  %v79 = vld [vmem:[%s1 + $0x78] sm:$0xff]
  %vm80 = vcmask 31744
  %v82 = vsel %vm80, %v60, 0
  %v85 = vsel %vm80, %v61, 0
  %v88 = vsel %vm80, %v62, 0
  %v91 = vsel %vm80, %v63, 0
  %v94 = vsel %vm80, %v64, 0
  %v97 = vsel %vm80, %v65, 0
  %v100 = vsel %vm80, %v66, 0
  %v103 = vsel %vm80, %v67, 0
  %v106 = vsel %vm80, %v68, 0
  %v109 = vsel %vm80, %v69, 0
  %v112 = vsel %vm80, %v70, 0
  %v115 = vsel %vm80, %v71, 0
  %v118 = vsel %vm80, %v72, 0
  %v121 = vsel %vm80, %v73, 0
  %v124 = vsel %vm80, %v74, 0
  %v127 = vsel %vm80, %v75, 0
  %v130 = vsel %vm80, %v76, 0
  %v133 = vsel %vm80, %v77, 0
  %v136 = vsel %vm80, %v78, 0
  %v139 = vsel %vm80, %v79, 0
  %141 = vmatprep.subr.mxu0 0.0
  %142 = vmatpush1.xpose.msra.mxu0 %v139
  %143 = vmatprep.subr.mxu0 0.0
  %144 = vmatpush1.xpose.msra.mxu0 %v136
  %145 = vmatprep.subr.mxu0 0.0
  %146 = vmatpush1.xpose.msra.mxu0 %v133
  %147 = vmatprep.subr.mxu0 0.0
  %148 = vmatpush1.xpose.msra.mxu0 %v130
  %149 = vmatprep.subr.mxu0 0.0
  %150 = vmatpush1.xpose.msra.mxu0 %v127
  %151 = vmatprep.subr.mxu0 0.0
  %152 = vmatpush1.xpose.msra.mxu0 %v124
  %153 = vmatprep.subr.mxu0 0.0
  %154 = vmatpush1.xpose.msra.mxu0 %v121
  %155 = vmatprep.subr.mxu0 0.0
  %156 = vmatpush1.xpose.msra.mxu0 %v118
  %157 = vmatprep.subr.mxu0 0.0
  %158 = vmatpush1.xpose.msra.mxu0 %v115
  %159 = vmatprep.subr.mxu0 0.0
  %160 = vmatpush1.xpose.msra.mxu0 %v112
  %161 = vmatprep.subr.mxu0 0.0
  %162 = vmatpush1.xpose.msra.mxu0 %v109
  %163 = vmatprep.subr.mxu0 0.0
  %164 = vmatpush1.xpose.msra.mxu0 %v106
  %165 = vmatprep.subr.mxu0 0.0
  %166 = vmatpush1.xpose.msra.mxu0 %v103
  %167 = vmatprep.subr.mxu0 0.0
  %168 = vmatpush1.xpose.msra.mxu0 %v100
  %169 = vmatprep.subr.mxu0 0.0
  %170 = vmatpush1.xpose.msra.mxu0 %v97
  %171 = vmatprep.subr.mxu0 0.0
  %172 = vmatpush1.xpose.msra.mxu0 %v94
  %173 = vmatprep.subr.mxu0 0.0
  %174 = vmatpush2.xpose.msra.mxu0 0.0
  %175 = vmatprep.subr.mxu0 0.0
  %176 = vmatpush2.xpose.msra.mxu0 0.0
  %177 = vmatprep.subr.mxu0 0.0
  %178 = vmatpush2.xpose.msra.mxu0 0.0
  %179 = vmatprep.subr.mxu0 0.0
  %180 = vmatpush2.xpose.msra.mxu0 0.0
  %181 = vmatprep.subr.mxu0 0.0
  %182 = vmatpush2.xpose.msra.mxu0 0.0
  %183 = vmatprep.subr.mxu0 0.0
  %184 = vmatpush2.xpose.msra.mxu0 0.0
  %185 = vmatprep.subr.mxu0 0.0
  %186 = vmatpush2.xpose.msra.mxu0 0.0
  %187 = vmatprep.subr.mxu0 0.0
  %188 = vmatpush2.xpose.msra.mxu0 0.0
  %189 = vmatprep.subr.mxu0 0.0
  %190 = vmatpush2.xpose.msra.mxu0 0.0
  %191 = vmatprep.subr.mxu0 0.0
  %192 = vmatpush2.xpose.msra.mxu0 0.0
  %193 = vmatprep.subr.mxu0 0.0
  %194 = vmatpush2.xpose.msra.mxu0 0.0
  %195 = vmatprep.subr.mxu0 0.0
  %196 = vmatpush2.xpose.msra.mxu0 0.0
  %197 = vmatprep.subr.mxu0 0.0
  %198 = vmatpush2.xpose.msra.mxu0 0.0
  %199 = vmatprep.subr.mxu0 0.0
  %200 = vmatpush2.xpose.msra.mxu0 0.0
  %201 = vmatprep.subr.mxu0 0.0
  %202 = vmatpush2.xpose.msra.mxu0 0.0
  %203 = vmatprep.subr.mxu0 0.0
  %204 = vmatpush2.xpose.msra.mxu0 0.0
  %205 = vmatprep.mubr.f32.mxu0 0.0
  %206 = vmatmul.mubr.f32.gmra.mxu0 %v82
  %v207 = vpop.f32.mrf.mxu0
  %v208 = vadd.f32 0.0, %v207
  %v209 = vpop.f32.mrf.mxu0
  %210 = vmatprep.mubr.f32.mxu0 0.0
  %211 = vmatmul.mubr.f32.gmra.mxu0 %v85
  %v212 = vpop.f32.mrf.mxu0
  %v213 = vadd.f32 0.0, %v212
  %v214 = vpop.f32.mrf.mxu0
  %215 = vmatprep.mubr.f32.mxu0 0.0
  %216 = vmatmul.mubr.f32.gmra.mxu0 %v88
  %v217 = vpop.f32.mrf.mxu0
  %v218 = vadd.f32 0.0, %v217
  %v219 = vpop.f32.mrf.mxu0
  %220 = vmatprep.mubr.f32.mxu0 0.0
  %221 = vmatmul.mubr.f32.gmra.mxu0 %v91
  %v222 = vpop.f32.mrf.mxu0
  %v223 = vadd.f32 0.0, %v222
  %v224 = vpop.f32.mrf.mxu0
  %225 = vdwg.mxu0
  %v227 = vsel %vm80, %v40, 0
  %v230 = vsel %vm80, %v41, 0
  %v233 = vsel %vm80, %v42, 0
  %v236 = vsel %vm80, %v43, 0
  %v239 = vsel %vm80, %v44, 0
  %v242 = vsel %vm80, %v45, 0
  %v245 = vsel %vm80, %v46, 0
  %v248 = vsel %vm80, %v47, 0
  %v251 = vsel %vm80, %v48, 0
  %v254 = vsel %vm80, %v49, 0
  %v257 = vsel %vm80, %v50, 0
  %v260 = vsel %vm80, %v51, 0
  %v263 = vsel %vm80, %v52, 0
  %v266 = vsel %vm80, %v53, 0
  %v269 = vsel %vm80, %v54, 0
  %v272 = vsel %vm80, %v55, 0
  %v275 = vsel %vm80, %v56, 0
  %v278 = vsel %vm80, %v57, 0
  %v281 = vsel %vm80, %v58, 0
  %v284 = vsel %vm80, %v59, 0
  %286 = vmatprep.subr.mxu0 0.0
  %287 = vmatpush1.xpose.msra.mxu0 %v284
  %288 = vmatprep.subr.mxu0 0.0
  %289 = vmatpush1.xpose.msra.mxu0 %v281
  %290 = vmatprep.subr.mxu0 0.0
  %291 = vmatpush1.xpose.msra.mxu0 %v278
  %292 = vmatprep.subr.mxu0 0.0
  %293 = vmatpush1.xpose.msra.mxu0 %v275
  %294 = vmatprep.subr.mxu0 0.0
  %295 = vmatpush1.xpose.msra.mxu0 %v272
  %296 = vmatprep.subr.mxu0 0.0
  %297 = vmatpush1.xpose.msra.mxu0 %v269
  %298 = vmatprep.subr.mxu0 0.0
  %299 = vmatpush1.xpose.msra.mxu0 %v266
  %300 = vmatprep.subr.mxu0 0.0
  %301 = vmatpush1.xpose.msra.mxu0 %v263
  %302 = vmatprep.subr.mxu0 0.0
  %303 = vmatpush1.xpose.msra.mxu0 %v260
  %304 = vmatprep.subr.mxu0 0.0
  %305 = vmatpush1.xpose.msra.mxu0 %v257
  %306 = vmatprep.subr.mxu0 0.0
  %307 = vmatpush1.xpose.msra.mxu0 %v254
  %308 = vmatprep.subr.mxu0 0.0
  %309 = vmatpush1.xpose.msra.mxu0 %v251
  %310 = vmatprep.subr.mxu0 0.0
  %311 = vmatpush1.xpose.msra.mxu0 %v248
  %312 = vmatprep.subr.mxu0 0.0
  %313 = vmatpush1.xpose.msra.mxu0 %v245
  %314 = vmatprep.subr.mxu0 0.0
  %315 = vmatpush1.xpose.msra.mxu0 %v242
  %316 = vmatprep.subr.mxu0 0.0
  %317 = vmatpush1.xpose.msra.mxu0 %v239
  %318 = vmatprep.subr.mxu0 0.0
  %319 = vmatpush2.xpose.msra.mxu0 0.0
  %320 = vmatprep.subr.mxu0 0.0
  %321 = vmatpush2.xpose.msra.mxu0 0.0
  %322 = vmatprep.subr.mxu0 0.0
  %323 = vmatpush2.xpose.msra.mxu0 0.0
  %324 = vmatprep.subr.mxu0 0.0
  %325 = vmatpush2.xpose.msra.mxu0 0.0
  %326 = vmatprep.subr.mxu0 0.0
  %327 = vmatpush2.xpose.msra.mxu0 0.0
  %328 = vmatprep.subr.mxu0 0.0
  %329 = vmatpush2.xpose.msra.mxu0 0.0
  %330 = vmatprep.subr.mxu0 0.0
  %331 = vmatpush2.xpose.msra.mxu0 0.0
  %332 = vmatprep.subr.mxu0 0.0
  %333 = vmatpush2.xpose.msra.mxu0 0.0
  %334 = vmatprep.subr.mxu0 0.0
  %335 = vmatpush2.xpose.msra.mxu0 0.0
  %336 = vmatprep.subr.mxu0 0.0
  %337 = vmatpush2.xpose.msra.mxu0 0.0
  %338 = vmatprep.subr.mxu0 0.0
  %339 = vmatpush2.xpose.msra.mxu0 0.0
  %340 = vmatprep.subr.mxu0 0.0
  %341 = vmatpush2.xpose.msra.mxu0 0.0
  %342 = vmatprep.subr.mxu0 0.0
  %343 = vmatpush2.xpose.msra.mxu0 0.0
  %344 = vmatprep.subr.mxu0 0.0
  %345 = vmatpush2.xpose.msra.mxu0 0.0
  %346 = vmatprep.subr.mxu0 0.0
  %347 = vmatpush2.xpose.msra.mxu0 0.0
  %348 = vmatprep.subr.mxu0 0.0
  %349 = vmatpush2.xpose.msra.mxu0 0.0
  %350 = vmatprep.mubr.f32.mxu0 0.0
  %351 = vmatmul.mubr.f32.gmra.mxu0 %v227
  %v352 = vpop.f32.mrf.mxu0
  %v353 = vadd.f32 %v208, %v352
  %v354 = vpop.f32.mrf.mxu0
  %355 = vmatprep.mubr.f32.mxu0 0.0
  %356 = vmatmul.mubr.f32.gmra.mxu0 %v230
  %v357 = vpop.f32.mrf.mxu0
  %v358 = vadd.f32 %v213, %v357
  %v359 = vpop.f32.mrf.mxu0
  %360 = vmatprep.mubr.f32.mxu0 0.0
  %361 = vmatmul.mubr.f32.gmra.mxu0 %v233
  %v362 = vpop.f32.mrf.mxu0
  %v363 = vadd.f32 %v218, %v362
  %v364 = vpop.f32.mrf.mxu0
  %365 = vmatprep.mubr.f32.mxu0 0.0
  %366 = vmatmul.mubr.f32.gmra.mxu0 %v236
  %v367 = vpop.f32.mrf.mxu0
  %v368 = vadd.f32 %v223, %v367
  %v369 = vpop.f32.mrf.mxu0
  %370 = vdwg.mxu0
  %v371 = vld [vmem:[%s4] sm:$0xff]
  %v372 = vld [vmem:[%s4 + $0x8] sm:$0xff]
  %v373 = vld [vmem:[%s4 + $0x10] sm:$0xff]
  %v374 = vld [vmem:[%s4 + $0x18] sm:$0xff]
  %376 = vset.pattern.permute.xlu0 0
  %377 = vperm.xlu0 %376, %v371
  %v378 = vpop.permute.xlu0 %377
  %381 = vset.pattern.permute.xlu0 0
  %382 = vperm.xlu0 %381, %v372
  %v383 = vpop.permute.xlu0 %382
  %386 = vset.pattern.permute.xlu0 0
  %387 = vperm.xlu0 %386, %v373
  %v388 = vpop.permute.xlu0 %387
  %391 = vset.pattern.permute.xlu0 0
  %392 = vperm.xlu0 %391, %v374
  %v393 = vpop.permute.xlu0 %392
  %v395 = vadd.f32 %v353, %v378
  %v396 = vadd.f32 %v358, %v383
  %v397 = vadd.f32 %v363, %v388
  %v398 = vadd.f32 %v368, %v393
  %vm399 = vcmp.gt.f32.partialorder %v395, 0.0
  %vm400 = vcmp.gt.f32.partialorder %v396, 0.0
  %vm401 = vcmp.gt.f32.partialorder %v397, 0.0
  %vm402 = vcmp.gt.f32.partialorder %v398, 0.0
  %v403 = vmul.f32 %v395, 0.01
  %v404 = vmul.f32 %v396, 0.01
  %v405 = vmul.f32 %v397, 0.01
  %v406 = vmul.f32 %v398, 0.01
  %v407 = vsel %vm399, %v395, %v403
  %v408 = vsel %vm400, %v396, %v404
  %v409 = vsel %vm401, %v397, %v405
  %v410 = vsel %vm402, %v398, %v406
  %v411 = vld [vmem:[%s5] sm:$0xff]
  %v412 = vld [vmem:[%s5 + $0x8] sm:$0xff]
  %v413 = vld [vmem:[%s5 + $0x10] sm:$0xff]
  %v414 = vld [vmem:[%s5 + $0x18] sm:$0xff]
  %v415 = vld [vmem:[%s6] sm:$0xff]
  %v416 = vld [vmem:[%s6 + $0x8] sm:$0xff]
  %v417 = vld [vmem:[%s6 + $0x10] sm:$0xff]
  %v418 = vld [vmem:[%s6 + $0x18] sm:$0xff]
  %420 = vset.pattern.permute.xlu0 0
  %421 = vperm.xlu0 %420, %v415
  %v422 = vpop.permute.xlu0 %421
  %425 = vset.pattern.permute.xlu0 0
  %426 = vperm.xlu0 %425, %v416
  %v427 = vpop.permute.xlu0 %426
  %430 = vset.pattern.permute.xlu0 0
  %431 = vperm.xlu0 %430, %v417
  %v432 = vpop.permute.xlu0 %431
  %435 = vset.pattern.permute.xlu0 0
  %436 = vperm.xlu0 %435, %v418
  %v437 = vpop.permute.xlu0 %436
  %vm439 = vcmask 261120
  %v441 = vsel %vm439, %v411, 0
  %v444 = vsel %vm439, %v412, 0
  %v447 = vsel %vm439, %v413, 0
  %v450 = vsel %vm439, %v414, 0
  %452 = vmatprep.subr.mxu0 0.0
  %453 = vmatpush1.msra.mxu0 0.0
  %454 = vmatprep.subr.mxu0 0.0
  %455 = vmatpush1.msra.mxu0 0.0
  %456 = vmatprep.subr.mxu0 0.0
  %457 = vmatpush1.msra.mxu0 0.0
  %458 = vmatprep.subr.mxu0 0.0
  %459 = vmatpush1.msra.mxu0 0.0
  %460 = vmatprep.subr.mxu0 0.0
  %461 = vmatpush1.msra.mxu0 0.0
  %462 = vmatprep.subr.mxu0 0.0
  %463 = vmatpush1.msra.mxu0 0.0
  %464 = vmatprep.subr.mxu0 0.0
  %465 = vmatpush1.msra.mxu0 0.0
  %466 = vmatprep.subr.mxu0 0.0
  %467 = vmatpush1.msra.mxu0 0.0
  %468 = vmatprep.subr.mxu0 0.0
  %469 = vmatpush1.msra.mxu0 0.0
  %470 = vmatprep.subr.mxu0 0.0
  %471 = vmatpush1.msra.mxu0 0.0
  %472 = vmatprep.subr.mxu0 0.0
  %473 = vmatpush1.msra.mxu0 0.0
  %474 = vmatprep.subr.mxu0 0.0
  %475 = vmatpush1.msra.mxu0 0.0
  %476 = vmatprep.subr.mxu0 0.0
  %477 = vmatpush1.msra.mxu0 %v410
  %478 = vmatprep.subr.mxu0 0.0
  %479 = vmatpush1.msra.mxu0 %v409
  %480 = vmatprep.subr.mxu0 0.0
  %481 = vmatpush1.msra.mxu0 %v408
  %482 = vmatprep.subr.mxu0 0.0
  %483 = vmatpush1.msra.mxu0 %v407
  %484 = vmatprep.subr.mxu0 0.0
  %485 = vmatpush2.msra.mxu0 0.0
  %486 = vmatprep.subr.mxu0 0.0
  %487 = vmatpush2.msra.mxu0 0.0
  %488 = vmatprep.subr.mxu0 0.0
  %489 = vmatpush2.msra.mxu0 0.0
  %490 = vmatprep.subr.mxu0 0.0
  %491 = vmatpush2.msra.mxu0 0.0
  %492 = vmatprep.subr.mxu0 0.0
  %493 = vmatpush2.msra.mxu0 0.0
  %494 = vmatprep.subr.mxu0 0.0
  %495 = vmatpush2.msra.mxu0 0.0
  %496 = vmatprep.subr.mxu0 0.0
  %497 = vmatpush2.msra.mxu0 0.0
  %498 = vmatprep.subr.mxu0 0.0
  %499 = vmatpush2.msra.mxu0 0.0
  %500 = vmatprep.subr.mxu0 0.0
  %501 = vmatpush2.msra.mxu0 0.0
  %502 = vmatprep.subr.mxu0 0.0
  %503 = vmatpush2.msra.mxu0 0.0
  %504 = vmatprep.subr.mxu0 0.0
  %505 = vmatpush2.msra.mxu0 0.0
  %506 = vmatprep.subr.mxu0 0.0
  %507 = vmatpush2.msra.mxu0 0.0
  %508 = vmatprep.subr.mxu0 0.0
  %509 = vmatpush2.msra.mxu0 0.0
  %510 = vmatprep.subr.mxu0 0.0
  %511 = vmatpush2.msra.mxu0 0.0
  %512 = vmatprep.subr.mxu0 0.0
  %513 = vmatpush2.msra.mxu0 0.0
  %514 = vmatprep.subr.mxu0 0.0
  %515 = vmatpush2.msra.mxu0 0.0
  %516 = vmatprep.mubr.f32.mxu0 0.0
  %517 = vmatmul.mubr.f32.gmra.mxu0 %v441
  %v518 = vpop.f32.mrf.mxu0
  %v519 = vadd.f32 %v422, %v518
  %v520 = vpop.f32.mrf.mxu0
  %521 = vmatprep.mubr.f32.mxu0 0.0
  %522 = vmatmul.mubr.f32.gmra.mxu0 %v444
  %v523 = vpop.f32.mrf.mxu0
  %v524 = vadd.f32 %v427, %v523
  %v525 = vpop.f32.mrf.mxu0
  %526 = vmatprep.mubr.f32.mxu0 0.0
  %527 = vmatmul.mubr.f32.gmra.mxu0 %v447
  %v528 = vpop.f32.mrf.mxu0
  %v529 = vadd.f32 %v432, %v528
  %v530 = vpop.f32.mrf.mxu0
  %531 = vmatprep.mubr.f32.mxu0 0.0
  %532 = vmatmul.mubr.f32.gmra.mxu0 %v450
  %v533 = vpop.f32.mrf.mxu0
  %v534 = vadd.f32 %v437, %v533
  %v535 = vpop.f32.mrf.mxu0
  %536 = vdwg.mxu0
  %vm537 = vcmp.gt.f32.partialorder %v519, 0.0
  %vm538 = vcmp.gt.f32.partialorder %v524, 0.0
  %vm539 = vcmp.gt.f32.partialorder %v529, 0.0
  %vm540 = vcmp.gt.f32.partialorder %v534, 0.0
  %v541 = vmul.f32 %v519, 0.01
  %v542 = vmul.f32 %v524, 0.01
  %v543 = vmul.f32 %v529, 0.01
  %v544 = vmul.f32 %v534, 0.01
  %v545 = vsel %vm537, %v519, %v541
  %v546 = vsel %vm538, %v524, %v542
  %v547 = vsel %vm539, %v529, %v543
  %v548 = vsel %vm540, %v534, %v544
  %v549 = vld [vmem:[%s7] sm:$0xff]
  %v550 = vld [vmem:[%s7 + $0x8] sm:$0xff]
  %v551 = vld [vmem:[%s7 + $0x10] sm:$0xff]
  %v552 = vld [vmem:[%s7 + $0x18] sm:$0xff]
  %v553 = vld [vmem:[%s8] sm:$0xff]
  %v554 = vld [vmem:[%s8 + $0x8] sm:$0xff]
  %v555 = vld [vmem:[%s8 + $0x10] sm:$0xff]
  %v556 = vld [vmem:[%s8 + $0x18] sm:$0xff]
  %558 = vset.pattern.permute.xlu0 0
  %559 = vperm.xlu0 %558, %v553
  %v560 = vpop.permute.xlu0 %559
  %563 = vset.pattern.permute.xlu0 0
  %564 = vperm.xlu0 %563, %v554
  %v565 = vpop.permute.xlu0 %564
  %568 = vset.pattern.permute.xlu0 0
  %569 = vperm.xlu0 %568, %v555
  %v570 = vpop.permute.xlu0 %569
  %573 = vset.pattern.permute.xlu0 0
  %574 = vperm.xlu0 %573, %v556
  %v575 = vpop.permute.xlu0 %574
  %v578 = vsel %vm439, %v549, 0
  %v581 = vsel %vm439, %v550, 0
  %v584 = vsel %vm439, %v551, 0
  %v587 = vsel %vm439, %v552, 0
  %589 = vmatprep.subr.mxu0 0.0
  %590 = vmatpush1.msra.mxu0 0.0
  %591 = vmatprep.subr.mxu0 0.0
  %592 = vmatpush1.msra.mxu0 0.0
  %593 = vmatprep.subr.mxu0 0.0
  %594 = vmatpush1.msra.mxu0 0.0
  %595 = vmatprep.subr.mxu0 0.0
  %596 = vmatpush1.msra.mxu0 0.0
  %597 = vmatprep.subr.mxu0 0.0
  %598 = vmatpush1.msra.mxu0 0.0
  %599 = vmatprep.subr.mxu0 0.0
  %600 = vmatpush1.msra.mxu0 0.0
  %601 = vmatprep.subr.mxu0 0.0
  %602 = vmatpush1.msra.mxu0 0.0
  %603 = vmatprep.subr.mxu0 0.0
  %604 = vmatpush1.msra.mxu0 0.0
  %605 = vmatprep.subr.mxu0 0.0
  %606 = vmatpush1.msra.mxu0 0.0
  %607 = vmatprep.subr.mxu0 0.0
  %608 = vmatpush1.msra.mxu0 0.0
  %609 = vmatprep.subr.mxu0 0.0
  %610 = vmatpush1.msra.mxu0 0.0
  %611 = vmatprep.subr.mxu0 0.0
  %612 = vmatpush1.msra.mxu0 0.0
  %613 = vmatprep.subr.mxu0 0.0
  %614 = vmatpush1.msra.mxu0 %v548
  %615 = vmatprep.subr.mxu0 0.0
  %616 = vmatpush1.msra.mxu0 %v547
  %617 = vmatprep.subr.mxu0 0.0
  %618 = vmatpush1.msra.mxu0 %v546
  %619 = vmatprep.subr.mxu0 0.0
  %620 = vmatpush1.msra.mxu0 %v545
  %621 = vmatprep.subr.mxu0 0.0
  %622 = vmatpush2.msra.mxu0 0.0
  %623 = vmatprep.subr.mxu0 0.0
  %624 = vmatpush2.msra.mxu0 0.0
  %625 = vmatprep.subr.mxu0 0.0
  %626 = vmatpush2.msra.mxu0 0.0
  %627 = vmatprep.subr.mxu0 0.0
  %628 = vmatpush2.msra.mxu0 0.0
  %629 = vmatprep.subr.mxu0 0.0
  %630 = vmatpush2.msra.mxu0 0.0
  %631 = vmatprep.subr.mxu0 0.0
  %632 = vmatpush2.msra.mxu0 0.0
  %633 = vmatprep.subr.mxu0 0.0
  %634 = vmatpush2.msra.mxu0 0.0
  %635 = vmatprep.subr.mxu0 0.0
  %636 = vmatpush2.msra.mxu0 0.0
  %637 = vmatprep.subr.mxu0 0.0
  %638 = vmatpush2.msra.mxu0 0.0
  %639 = vmatprep.subr.mxu0 0.0
  %640 = vmatpush2.msra.mxu0 0.0
  %641 = vmatprep.subr.mxu0 0.0
  %642 = vmatpush2.msra.mxu0 0.0
  %643 = vmatprep.subr.mxu0 0.0
  %644 = vmatpush2.msra.mxu0 0.0
  %645 = vmatprep.subr.mxu0 0.0
  %646 = vmatpush2.msra.mxu0 0.0
  %647 = vmatprep.subr.mxu0 0.0
  %648 = vmatpush2.msra.mxu0 0.0
  %649 = vmatprep.subr.mxu0 0.0
  %650 = vmatpush2.msra.mxu0 0.0
  %651 = vmatprep.subr.mxu0 0.0
  %652 = vmatpush2.msra.mxu0 0.0
  %653 = vmatprep.mubr.f32.mxu0 0.0
  %654 = vmatmul.mubr.f32.gmra.mxu0 %v578
  %v655 = vpop.f32.mrf.mxu0
  %v656 = vadd.f32 %v560, %v655
  %v657 = vpop.f32.mrf.mxu0
  %658 = vmatprep.mubr.f32.mxu0 0.0
  %659 = vmatmul.mubr.f32.gmra.mxu0 %v581
  %v660 = vpop.f32.mrf.mxu0
  %v661 = vadd.f32 %v565, %v660
  %v662 = vpop.f32.mrf.mxu0
  %663 = vmatprep.mubr.f32.mxu0 0.0
  %664 = vmatmul.mubr.f32.gmra.mxu0 %v584
  %v665 = vpop.f32.mrf.mxu0
  %v666 = vadd.f32 %v570, %v665
  %v667 = vpop.f32.mrf.mxu0
  %668 = vmatprep.mubr.f32.mxu0 0.0
  %669 = vmatmul.mubr.f32.gmra.mxu0 %v587
  %v670 = vpop.f32.mrf.mxu0
  %v671 = vadd.f32 %v575, %v670
  %v672 = vpop.f32.mrf.mxu0
  %673 = vdwg.mxu0
  %vm674 = vcmp.gt.f32.partialorder %v656, 0.0
  %vm675 = vcmp.gt.f32.partialorder %v661, 0.0
  %vm676 = vcmp.gt.f32.partialorder %v666, 0.0
  %vm677 = vcmp.gt.f32.partialorder %v671, 0.0
  %v678 = vmul.f32 %v656, 0.01
  %v679 = vmul.f32 %v661, 0.01
  %v680 = vmul.f32 %v666, 0.01
  %v681 = vmul.f32 %v671, 0.01
  %v682 = vsel %vm674, %v656, %v678
  %v683 = vsel %vm675, %v661, %v679
  %v684 = vsel %vm676, %v666, %v680
  %v685 = vsel %vm677, %v671, %v681
  %v686 = vld [vmem:[%s9] sm:$0x1]
  %v687 = vld [vmem:[#allocation2] sm:$0x1]
  %689 = vset.pattern.permute.xlu0 0
  %690 = vperm.xlu0 %689, %v687
  %v691 = vpop.permute.xlu0 %690
  %v693 = vlaneseq
  %v694 = vshrl.u32 %v693, 7
  %v695 = vsub.s32 0, %v694
  %v696 = vrot.slane %v691, %v695
  %v698 = vsel %vm439, %v686, 0
  %700 = vmatprep.subr.mxu0 0.0
  %701 = vmatpush1.msra.mxu0 0.0
  %702 = vmatprep.subr.mxu0 0.0
  %703 = vmatpush1.msra.mxu0 0.0
  %704 = vmatprep.subr.mxu0 0.0
  %705 = vmatpush1.msra.mxu0 0.0
  %706 = vmatprep.subr.mxu0 0.0
  %707 = vmatpush1.msra.mxu0 0.0
  %708 = vmatprep.subr.mxu0 0.0
  %709 = vmatpush1.msra.mxu0 0.0
  %710 = vmatprep.subr.mxu0 0.0
  %711 = vmatpush1.msra.mxu0 0.0
  %712 = vmatprep.subr.mxu0 0.0
  %713 = vmatpush1.msra.mxu0 0.0
  %714 = vmatprep.subr.mxu0 0.0
  %715 = vmatpush1.msra.mxu0 0.0
  %716 = vmatprep.subr.mxu0 0.0
  %717 = vmatpush1.msra.mxu0 0.0
  %718 = vmatprep.subr.mxu0 0.0
  %719 = vmatpush1.msra.mxu0 0.0
  %720 = vmatprep.subr.mxu0 0.0
  %721 = vmatpush1.msra.mxu0 0.0
  %722 = vmatprep.subr.mxu0 0.0
  %723 = vmatpush1.msra.mxu0 0.0
  %724 = vmatprep.subr.mxu0 0.0
  %725 = vmatpush1.msra.mxu0 %v685
  %726 = vmatprep.subr.mxu0 0.0
  %727 = vmatpush1.msra.mxu0 %v684
  %728 = vmatprep.subr.mxu0 0.0
  %729 = vmatpush1.msra.mxu0 %v683
  %730 = vmatprep.subr.mxu0 0.0
  %731 = vmatpush1.msra.mxu0 %v682
  %732 = vmatprep.subr.mxu0 0.0
  %733 = vmatpush2.msra.mxu0 0.0
  %734 = vmatprep.subr.mxu0 0.0
  %735 = vmatpush2.msra.mxu0 0.0
  %736 = vmatprep.subr.mxu0 0.0
  %737 = vmatpush2.msra.mxu0 0.0
  %738 = vmatprep.subr.mxu0 0.0
  %739 = vmatpush2.msra.mxu0 0.0
  %740 = vmatprep.subr.mxu0 0.0
  %741 = vmatpush2.msra.mxu0 0.0
  %742 = vmatprep.subr.mxu0 0.0
  %743 = vmatpush2.msra.mxu0 0.0
  %744 = vmatprep.subr.mxu0 0.0
  %745 = vmatpush2.msra.mxu0 0.0
  %746 = vmatprep.subr.mxu0 0.0
  %747 = vmatpush2.msra.mxu0 0.0
  %748 = vmatprep.subr.mxu0 0.0
  %749 = vmatpush2.msra.mxu0 0.0
  %750 = vmatprep.subr.mxu0 0.0
  %751 = vmatpush2.msra.mxu0 0.0
  %752 = vmatprep.subr.mxu0 0.0
  %753 = vmatpush2.msra.mxu0 0.0
  %754 = vmatprep.subr.mxu0 0.0
  %755 = vmatpush2.msra.mxu0 0.0
  %756 = vmatprep.subr.mxu0 0.0
  %757 = vmatpush2.msra.mxu0 0.0
  %758 = vmatprep.subr.mxu0 0.0
  %759 = vmatpush2.msra.mxu0 0.0
  %760 = vmatprep.subr.mxu0 0.0
  %761 = vmatpush2.msra.mxu0 0.0
  %762 = vmatprep.subr.mxu0 0.0
  %763 = vmatpush2.msra.mxu0 0.0
  %764 = vmatprep.mubr.f32.mxu0 0.0
  %765 = vmatmul.mubr.f32.gmra.mxu0 %v698
  %v766 = vpop.f32.mrf.mxu0
  %v767 = vadd.f32 %v696, %v766
  %v768 = vpop.f32.mrf.mxu0
  %769 = vdwg.mxu0
  %770 = vst [vmem:[%s11] sm:$0x1] %v767
  // Predicated region
  $region46: #{critic_forward.1} parent=0 // pred_check
    _
  $region47: #{critic_forward.1} parent=0 // pred_check_branch
    %772 = sbr.rel (0) target = $region49
  $region48: #{critic_forward.1} parent=0 // pred_region
    _
  $region49: #{critic_forward.1} parent=0 // pred_fallthru
    _
  // Predicated region
  $region50: #{critic_forward.1} parent=0 // pred_check
    _
  $region51: #{critic_forward.1} parent=0 // pred_check_branch
    %774 = sbr.rel (0) target = $region53
  $region52: #{critic_forward.1} parent=0 // pred_region
    _
  $region53: #{critic_forward.1} parent=0 // pred_fallthru
    _

</llo_original>
